<compile_context>
chip_gen: v5e
topology: v5e:2x2
jax: 0.10.0
libtpu: 0.0.40
codegen_flags: <defaults>
</compile_context>

<pallas_src>
import functools

import jax
import jax.numpy as jnp
from jax.experimental import pallas as pl
from jax.experimental.pallas import tpu as pltpu

_LANE = 128
_SUBLANE = 8


def _round_up(x, m):
    return (x + m - 1) // m * m


def _gate_pad_cols(w_t, H, Hp):
    """w_t: (D_in, 4H) -> (D_in, 4*Hp), each gate block zero-padded to Hp lanes."""
    blocks = []
    for k in range(4):
        blk = w_t[:, k * H:(k + 1) * H]
        blocks.append(jnp.pad(blk, ((0, 0), (0, Hp - H))))
    return jnp.concatenate(blocks, axis=1)


def _gate_pad_bias(b, H, Hp):
    """b: (4H,) -> (4*Hp,), gate-block padded."""
    blocks = [jnp.pad(b[k * H:(k + 1) * H], (0, Hp - H)) for k in range(4)]
    return jnp.concatenate(blocks)


def _make_encoder_kernel(n_layers, T, Bp, Hp):
    G = 4 * Hp

    def kernel(g0_ref, wih_ref, whh_ref, b_ref,
               h_out_ref, c_out_ref,
               gates_sc, x_sc, h_sc, c_sc):
        for layer in range(n_layers):          # static unrolled layer loop
            h_sc[...] = jnp.zeros_like(h_sc)
            c_sc[...] = jnp.zeros_like(c_sc)
            gate_src = g0_ref if layer == 0 else gates_sc

            @pl.loop(0, T)
            def _step(t):
                h = h_sc[...]                  # (Bp, Hp)
                c = c_sc[...]                  # (Bp, Hp)
                # Only the truly recurrent matmul runs per step.
                g = gate_src[t] + jnp.dot(
                    h, whh_ref[layer], preferred_element_type=jnp.float32)
                # PyTorch gate order: i, f, g, o (128-lane aligned slices).
                i_g = jax.nn.sigmoid(g[:, 0 * Hp:1 * Hp])
                f_g = jax.nn.sigmoid(g[:, 1 * Hp:2 * Hp])
                g_g = jnp.tanh(g[:, 2 * Hp:3 * Hp])
                o_g = jax.nn.sigmoid(g[:, 3 * Hp:4 * Hp])
                c_new = f_g * c + i_g * g_g
                h_new = o_g * jnp.tanh(c_new)
                c_sc[...] = c_new
                h_sc[...] = h_new
                x_sc[t] = h_new                # layer output, stays in VMEM

            # Final (h, c) of this layer -- written exactly once.
            h_out_ref[layer] = h_sc[...]
            c_out_ref[layer] = c_sc[...]

            if layer < n_layers - 1:
                # Bulk input projection for the NEXT layer over the whole
                # sequence: one (T*Bp, Hp) x (Hp, 4Hp) matmul + bias.
                x_all = x_sc[...].reshape(T * Bp, Hp)
                g_next = (jnp.dot(x_all, wih_ref[layer],
                                  preferred_element_type=jnp.float32)
                          + b_ref[layer])
                gates_sc[...] = g_next.reshape(T, Bp, G)

    return kernel


def encoder_pallas(embedded, params, n_layers, hid_dim):
    """embedded: (T, B, E) f32. Returns (hidden, cell), each (n_layers, B, H)."""
    T, B, E = embedded.shape
    H = hid_dim
    Hp = max(_LANE, _round_up(H, _LANE))
    Bp = max(_SUBLANE, _round_up(B, _SUBLANE))
    G = 4 * Hp
    L = n_layers

    f32 = jnp.float32

    # ---- Hoisted layer-0 input projection (one big XLA matmul) ------------
    wih0 = _gate_pad_cols(params["w_ih_0"].astype(f32).T, H, Hp)        # (E, G)
    b0 = _gate_pad_bias((params["b_ih_0"] + params["b_hh_0"]).astype(f32), H, Hp)
    g0 = jnp.einsum("tbe,eg->tbg", embedded.astype(f32), wih0) + b0     # (T, B, G)
    g0 = jnp.pad(g0, ((0, 0), (0, Bp - B), (0, 0)))                     # (T, Bp, G)

    # ---- Recurrent weights, padded + transposed ----------------------------
    whh = jnp.stack([
        jnp.pad(_gate_pad_cols(params[f"w_hh_{l}"].astype(f32).T, H, Hp),
                ((0, Hp - H), (0, 0)))
        for l in range(L)])                                             # (L, Hp, G)

    if L > 1:
        wih_rest = jnp.stack([
            jnp.pad(_gate_pad_cols(params[f"w_ih_{l}"].astype(f32).T, H, Hp),
                    ((0, Hp - H), (0, 0)))
            for l in range(1, L)])                                      # (L-1, Hp, G)
        b_rest = jnp.stack([
            _gate_pad_bias((params[f"b_ih_{l}"] + params[f"b_hh_{l}"]).astype(f32),
                           H, Hp)[None, :]
            for l in range(1, L)])                                      # (L-1, 1, G)
    else:
        wih_rest = jnp.zeros((1, Hp, G), f32)   # dummies, never read when L == 1
        b_rest = jnp.zeros((1, 1, G), f32)
    Lw = wih_rest.shape[0]

    kernel = _make_encoder_kernel(L, T, Bp, Hp)

    flops = (L * T * 2 * Bp * Hp * G          # recurrent h @ W_hh^T
             + (L - 1) * 2 * T * Bp * Hp * G  # in-kernel bulk input projections
             + 10 * L * T * Bp * G)           # elementwise cell update
    transcendentals = 5 * L * T * Bp * Hp
    bytes_accessed = 4 * (g0.size + whh.size + wih_rest.size + b_rest.size
                          + 2 * L * Bp * Hp)

    grid_spec = pltpu.PrefetchScalarGridSpec(
        num_scalar_prefetch=0,
        grid=(1,),
        in_specs=[
            pl.BlockSpec((T, Bp, G), lambda i: (0, 0, 0)),   # layer-0 gates
            pl.BlockSpec((Lw, Hp, G), lambda i: (0, 0, 0)),  # W_ih^T layers 1..L-1
            pl.BlockSpec((L, Hp, G), lambda i: (0, 0, 0)),   # W_hh^T all layers
            pl.BlockSpec((Lw, 1, G), lambda i: (0, 0, 0)),   # biases layers 1..L-1
        ],
        out_specs=[
            pl.BlockSpec((L, Bp, Hp), lambda i: (0, 0, 0)),  # final h
            pl.BlockSpec((L, Bp, Hp), lambda i: (0, 0, 0)),  # final c
        ],
        scratch_shapes=[
            pltpu.VMEM((T, Bp, G), f32),    # gates of the current (>=1) layer
            pltpu.VMEM((T, Bp, Hp), f32),   # current layer's output sequence
            pltpu.VMEM((Bp, Hp), f32),      # h carry
            pltpu.VMEM((Bp, Hp), f32),      # c carry
        ],
    )

    h_pad, c_pad = pl.pallas_call(
        kernel,
        out_shape=(jax.ShapeDtypeStruct((L, Bp, Hp), f32),
                   jax.ShapeDtypeStruct((L, Bp, Hp), f32)),
        grid_spec=grid_spec,
        compiler_params=pltpu.CompilerParams(
            dimension_semantics=("arbitrary",)),
        cost_estimate=pl.CostEstimate(flops=int(flops),
                                      transcendentals=int(transcendentals),
                                      bytes_accessed=int(bytes_accessed)),
    )(g0, wih_rest, whh, b_rest)

    return h_pad[:, :B, :H], c_pad[:, :B, :H]


def init_encoder_params(key, input_dim, emb_dim, hid_dim, n_layers):
    """Deterministic synthetic parameters, PyTorch LSTM weight layout."""
    params = {}
    k_emb, key = jax.random.split(key)
    params["embedding"] = 0.1 * jax.random.normal(
        k_emb, (input_dim, emb_dim), jnp.float32)
    for layer in range(n_layers):
        d_in = emb_dim if layer == 0 else hid_dim
        k1, k2, k3, k4, key = jax.random.split(key, 5)
        scale = 1.0 / jnp.sqrt(hid_dim)
        params[f"w_ih_{layer}"] = scale * jax.random.normal(
            k1, (4 * hid_dim, d_in), jnp.float32)
        params[f"w_hh_{layer}"] = scale * jax.random.normal(
            k2, (4 * hid_dim, hid_dim), jnp.float32)
        params[f"b_ih_{layer}"] = scale * jax.random.normal(
            k3, (4 * hid_dim,), jnp.float32)
        params[f"b_hh_{layer}"] = scale * jax.random.normal(
            k4, (4 * hid_dim,), jnp.float32)
    return params


@functools.partial(jax.jit, static_argnames=("n_layers", "hid_dim"))
def encoder_forward(src, params, n_layers, hid_dim):
    """src: (T, B) int32. Returns (hidden, cell), each (n_layers, B, H)."""
    # Embedding lookup + (identity) eval-mode dropout -- glue, not hot path.
    embedded = jnp.take(params["embedding"], src, axis=0)   # (T, B, E)
    return encoder_pallas(embedded, params, n_layers, hid_dim)


def _reference_forward(src, params, n_layers):
    """Pure-JAX reference (lax.scan LSTM) for correctness checking."""
    x = jnp.take(params["embedding"], src, axis=0)
    hs, cs = [], []
    for layer in range(n_layers):
        w_ih = params[f"w_ih_{layer}"]
        w_hh = params[f"w_hh_{layer}"]
        b = params[f"b_ih_{layer}"] + params[f"b_hh_{layer}"]
        H = w_hh.shape[1]
        B = x.shape[1]

        def step(carry, x_t):
            h, c = carry
            gates = x_t @ w_ih.T + h @ w_hh.T + b
            i = jax.nn.sigmoid(gates[:, 0 * H:1 * H])
            f = jax.nn.sigmoid(gates[:, 1 * H:2 * H])
            g = jnp.tanh(gates[:, 2 * H:3 * H])
            o = jax.nn.sigmoid(gates[:, 3 * H:4 * H])
            c_new = f * c + i * g
            h_new = o * jnp.tanh(c_new)
            return (h_new, c_new), h_new

        init = (jnp.zeros((B, H), jnp.float32), jnp.zeros((B, H), jnp.float32))
        (h_fin, c_fin), outs = jax.lax.scan(step, init, x)
        x = outs
        hs.append(h_fin)
        cs.append(c_fin)
    return jnp.stack(hs, axis=0), jnp.stack(cs, axis=0)


if __name__ == "__main__":
    # Small, deterministic config consistent with the module's __init__.
    INPUT_DIM = 50     # vocab size
    EMB_DIM = 32
    HID_DIM = 32
    N_LAYERS = 2
    SEQ_LEN = 8
    BATCH = 2

    key = jax.random.PRNGKey(0)
    k_params, k_src = jax.random.split(key)

    params = init_encoder_params(k_params, INPUT_DIM, EMB_DIM, HID_DIM, N_LAYERS)
    src = jax.random.randint(k_src, (SEQ_LEN, BATCH), 0, INPUT_DIM, jnp.int32)

    hidden, cell = encoder_forward(src, params, N_LAYERS, HID_DIM)
    hidden, cell = jax.block_until_ready((hidden, cell))

    assert hidden.shape == (N_LAYERS, BATCH, HID_DIM)
    assert cell.shape == (N_LAYERS, BATCH, HID_DIM)

    # Sanity check against a pure-JAX reference.
    ref_h, ref_c = _reference_forward(src, params, N_LAYERS)
    assert jnp.allclose(hidden, ref_h, atol=1e-4, rtol=1e-4)
    assert jnp.allclose(cell, ref_c, atol=1e-4, rtol=1e-4)

    print("KERNEL_OK")
</pallas_src>

<mosaic_0001>
module attributes {stable_mosaic.version = 11 : i64} {
  func.func @kernel(%arg0: i32, %arg1: memref<8x8x512xf32, #tpu.memory_space<vmem>>, %arg2: memref<1x128x512xf32, #tpu.memory_space<vmem>>, %arg3: memref<2x128x512xf32, #tpu.memory_space<vmem>>, %arg4: memref<1x1x512xf32, #tpu.memory_space<vmem>>, %arg5: memref<2x8x128xf32, #tpu.memory_space<vmem>>, %arg6: memref<2x8x128xf32, #tpu.memory_space<vmem>>, %arg7: memref<8x8x512xf32, #tpu.memory_space<vmem>>, %arg8: memref<8x8x128xf32, #tpu.memory_space<vmem>>, %arg9: memref<8x128xf32, #tpu.memory_space<vmem>>, %arg10: memref<8x128xf32, #tpu.memory_space<vmem>>) attributes {dimension_semantics = [#tpu.dimension_semantics<arbitrary>], iteration_bounds = array<i64: 1>, scalar_prefetch = 0 : i64, scratch_operands = 4 : i64, tpu.core_type = #tpu.core_type<tc>, window_params = [{pipeline_mode = #tpu.pipeline_mode<synchronous>, transform_indices = @transform_0, window_bounds = array<i64: 8, 8, 512>}, {pipeline_mode = #tpu.pipeline_mode<synchronous>, transform_indices = @transform_1, window_bounds = array<i64: 1, 128, 512>}, {pipeline_mode = #tpu.pipeline_mode<synchronous>, transform_indices = @transform_2, window_bounds = array<i64: 2, 128, 512>}, {pipeline_mode = #tpu.pipeline_mode<synchronous>, transform_indices = @transform_3, window_bounds = array<i64: 1, 1, 512>}, {pipeline_mode = #tpu.pipeline_mode<synchronous>, transform_indices = @transform_4, window_bounds = array<i64: 2, 8, 128>}, {pipeline_mode = #tpu.pipeline_mode<synchronous>, transform_indices = @transform_5, window_bounds = array<i64: 2, 8, 128>}]} {
    %cst = arith.constant 0.000000e+00 : f32
    %0 = vector.broadcast %cst : f32 to vector<8x128xf32>
    %c0 = arith.constant 0 : index
    %c0_0 = arith.constant 0 : index
    %1 = vector.load %arg9[%c0, %c0_0] : memref<8x128xf32, #tpu.memory_space<vmem>>, vector<8x128xf32>
    tpu.vector_store %arg9[%c0, %c0_0], %0 {strides = array<i32>} : memref<8x128xf32, #tpu.memory_space<vmem>>, vector<8x128xf32>,
    %cst_1 = arith.constant 0.000000e+00 : f32
    %2 = vector.broadcast %cst_1 : f32 to vector<8x128xf32>
    %c0_2 = arith.constant 0 : index
    %c0_3 = arith.constant 0 : index
    %3 = vector.load %arg10[%c0_2, %c0_3] : memref<8x128xf32, #tpu.memory_space<vmem>>, vector<8x128xf32>
    tpu.vector_store %arg10[%c0_2, %c0_3], %2 {strides = array<i32>} : memref<8x128xf32, #tpu.memory_space<vmem>>, vector<8x128xf32>,
    %c0_i32 = arith.constant 0 : i32
    %c8_i32 = arith.constant 8 : i32
    %4 = arith.addi %c0_i32, %c8_i32 : i32
    %c1_i32 = arith.constant 1 : i32
    scf.for %arg11 = %c0_i32 to %4 step %c1_i32  : i32 {
      %c1_i32_47 = arith.constant 1 : i32
      %37 = arith.muli %arg11, %c1_i32_47 : i32
      %c0_i32_48 = arith.constant 0 : i32
      %38 = arith.addi %c0_i32_48, %37 : i32
      %c0_49 = arith.constant 0 : index
      %c0_50 = arith.constant 0 : index
      %39 = vector.load %arg9[%c0_49, %c0_50] : memref<8x128xf32, #tpu.memory_space<vmem>>, vector<8x128xf32>
      %c0_51 = arith.constant 0 : index
      %c0_52 = arith.constant 0 : index
      %40 = vector.load %arg10[%c0_51, %c0_52] : memref<8x128xf32, #tpu.memory_space<vmem>>, vector<8x128xf32>
      %41 = arith.index_cast %38 : i32 to index
      %c0_53 = arith.constant 0 : index
      %c0_54 = arith.constant 0 : index
      %42 = vector.load %arg1[%41, %c0_53, %c0_54] : memref<8x8x512xf32, #tpu.memory_space<vmem>>, vector<1x8x512xf32>
      %43 = vector.shape_cast %42 : vector<1x8x512xf32> to vector<8x512xf32>
      %c0_55 = arith.constant 0 : index
      %c0_56 = arith.constant 0 : index
      %c0_57 = arith.constant 0 : index
      %44 = vector.load %arg3[%c0_55, %c0_56, %c0_57] : memref<2x128x512xf32, #tpu.memory_space<vmem>>, vector<1x128x512xf32>
      %45 = vector.shape_cast %44 : vector<1x128x512xf32> to vector<128x512xf32>
      %cst_58 = arith.constant dense<0.000000e+00> : vector<8x512xf32>
      %46 = tpu.matmul %39, %45, %cst_58 {dimension_numbers = #tpu.dot_dimension_numbers<[1], [0], [0], [1], [0, 0, 1, 1], [], []>} : vector<8x128xf32>, vector<128x512xf32>, vector<8x512xf32> -> vector<8x512xf32>
      %47 = arith.addf %43, %46 : vector<8x512xf32>
      %48 = vector.extract_strided_slice %47 {offsets = [0, 0], sizes = [8, 128], strides = [1, 1]} : vector<8x512xf32> to vector<8x128xf32>
      %49 = arith.negf %48 : vector<8x128xf32>
      %50 = math.exp %49 : vector<8x128xf32>
      %cst_59 = arith.constant 1.000000e+00 : f32
      %51 = vector.broadcast %cst_59 : f32 to vector<8x128xf32>
      %52 = arith.addf %51, %50 : vector<8x128xf32>
      %53 = arith.divf %51, %52 : vector<8x128xf32>
      %54 = vector.extract_strided_slice %47 {offsets = [0, 128], sizes = [8, 128], strides = [1, 1]} : vector<8x512xf32> to vector<8x128xf32>
      %55 = arith.negf %54 : vector<8x128xf32>
      %56 = math.exp %55 : vector<8x128xf32>
      %cst_60 = arith.constant 1.000000e+00 : f32
      %57 = vector.broadcast %cst_60 : f32 to vector<8x128xf32>
      %58 = arith.addf %57, %56 : vector<8x128xf32>
      %59 = arith.divf %57, %58 : vector<8x128xf32>
      %60 = vector.extract_strided_slice %47 {offsets = [0, 256], sizes = [8, 128], strides = [1, 1]} : vector<8x512xf32> to vector<8x128xf32>
      %61 = math.tanh %60 : vector<8x128xf32>
      %62 = vector.extract_strided_slice %47 {offsets = [0, 384], sizes = [8, 128], strides = [1, 1]} : vector<8x512xf32> to vector<8x128xf32>
      %63 = arith.negf %62 : vector<8x128xf32>
      %64 = math.exp %63 : vector<8x128xf32>
      %cst_61 = arith.constant 1.000000e+00 : f32
      %65 = vector.broadcast %cst_61 : f32 to vector<8x128xf32>
      %66 = arith.addf %65, %64 : vector<8x128xf32>
      %67 = arith.divf %65, %66 : vector<8x128xf32>
      %68 = arith.mulf %59, %40 : vector<8x128xf32>
      %69 = arith.mulf %53, %61 : vector<8x128xf32>
      %70 = arith.addf %68, %69 : vector<8x128xf32>
      %71 = math.tanh %70 : vector<8x128xf32>
      %72 = arith.mulf %67, %71 : vector<8x128xf32>
      %c0_62 = arith.constant 0 : index
      %c0_63 = arith.constant 0 : index
      %73 = vector.load %arg10[%c0_62, %c0_63] : memref<8x128xf32, #tpu.memory_space<vmem>>, vector<8x128xf32>
      tpu.vector_store %arg10[%c0_62, %c0_63], %70 {strides = array<i32>} : memref<8x128xf32, #tpu.memory_space<vmem>>, vector<8x128xf32>,
      %c0_64 = arith.constant 0 : index
      %c0_65 = arith.constant 0 : index
      %74 = vector.load %arg9[%c0_64, %c0_65] : memref<8x128xf32, #tpu.memory_space<vmem>>, vector<8x128xf32>
      tpu.vector_store %arg9[%c0_64, %c0_65], %72 {strides = array<i32>} : memref<8x128xf32, #tpu.memory_space<vmem>>, vector<8x128xf32>,
      %75 = arith.index_cast %38 : i32 to index
      %c0_66 = arith.constant 0 : index
      %c0_67 = arith.constant 0 : index
      %76 = vector.load %arg8[%75, %c0_66, %c0_67] : memref<8x8x128xf32, #tpu.memory_space<vmem>>, vector<1x8x128xf32>
      %77 = vector.shape_cast %76 : vector<1x8x128xf32> to vector<8x128xf32>
      %78 = vector.shape_cast %72 : vector<8x128xf32> to vector<1x8x128xf32>
      tpu.vector_store %arg8[%75, %c0_66, %c0_67], %78 {strides = array<i32>} : memref<8x8x128xf32, #tpu.memory_space<vmem>>, vector<1x8x128xf32>,
    }
    %c8_i32_4 = arith.constant 8 : i32
    %c0_5 = arith.constant 0 : index
    %c0_6 = arith.constant 0 : index
    %5 = vector.load %arg9[%c0_5, %c0_6] : memref<8x128xf32, #tpu.memory_space<vmem>>, vector<8x128xf32>
    %c0_7 = arith.constant 0 : index
    %c0_8 = arith.constant 0 : index
    %c0_9 = arith.constant 0 : index
    %6 = vector.load %arg5[%c0_7, %c0_8, %c0_9] : memref<2x8x128xf32, #tpu.memory_space<vmem>>, vector<1x8x128xf32>
    %7 = vector.shape_cast %6 : vector<1x8x128xf32> to vector<8x128xf32>
    %8 = vector.shape_cast %5 : vector<8x128xf32> to vector<1x8x128xf32>
    tpu.vector_store %arg5[%c0_7, %c0_8, %c0_9], %8 {strides = array<i32>} : memref<2x8x128xf32, #tpu.memory_space<vmem>>, vector<1x8x128xf32>,
    %c0_10 = arith.constant 0 : index
    %c0_11 = arith.constant 0 : index
    %9 = vector.load %arg10[%c0_10, %c0_11] : memref<8x128xf32, #tpu.memory_space<vmem>>, vector<8x128xf32>
    %c0_12 = arith.constant 0 : index
    %c0_13 = arith.constant 0 : index
    %c0_14 = arith.constant 0 : index
    %10 = vector.load %arg6[%c0_12, %c0_13, %c0_14] : memref<2x8x128xf32, #tpu.memory_space<vmem>>, vector<1x8x128xf32>
    %11 = vector.shape_cast %10 : vector<1x8x128xf32> to vector<8x128xf32>
    %12 = vector.shape_cast %9 : vector<8x128xf32> to vector<1x8x128xf32>
    tpu.vector_store %arg6[%c0_12, %c0_13, %c0_14], %12 {strides = array<i32>} : memref<2x8x128xf32, #tpu.memory_space<vmem>>, vector<1x8x128xf32>,
    %c0_15 = arith.constant 0 : index
    %c0_16 = arith.constant 0 : index
    %c0_17 = arith.constant 0 : index
    %13 = vector.load %arg8[%c0_15, %c0_16, %c0_17] : memref<8x8x128xf32, #tpu.memory_space<vmem>>, vector<8x8x128xf32>
    %14 = vector.shape_cast %13 : vector<8x8x128xf32> to vector<64x128xf32>
    %c0_18 = arith.constant 0 : index
    %c0_19 = arith.constant 0 : index
    %c0_20 = arith.constant 0 : index
    %15 = vector.load %arg2[%c0_18, %c0_19, %c0_20] : memref<1x128x512xf32, #tpu.memory_space<vmem>>, vector<1x128x512xf32>
    %16 = vector.shape_cast %15 : vector<1x128x512xf32> to vector<128x512xf32>
    %cst_21 = arith.constant dense<0.000000e+00> : vector<64x512xf32>
    %17 = tpu.matmul %14, %16, %cst_21 {dimension_numbers = #tpu.dot_dimension_numbers<[1], [0], [0], [1], [0, 0, 1, 1], [], []>} : vector<64x128xf32>, vector<128x512xf32>, vector<64x512xf32> -> vector<64x512xf32>
    %c0_22 = arith.constant 0 : index
    %c0_23 = arith.constant 0 : index
    %c0_24 = arith.constant 0 : index
    %18 = vector.load %arg4[%c0_22, %c0_23, %c0_24] : memref<1x1x512xf32, #tpu.memory_space<vmem>>, vector<1x1x512xf32>
    %19 = vector.shape_cast %18 : vector<1x1x512xf32> to vector<1x512xf32>
    %20 = vector.broadcast %19 : vector<1x512xf32> to vector<64x512xf32>
    %21 = arith.addf %17, %20 : vector<64x512xf32>
    %22 = vector.shape_cast %21 : vector<64x512xf32> to vector<8x8x512xf32>
    %c0_25 = arith.constant 0 : index
    %c0_26 = arith.constant 0 : index
    %c0_27 = arith.constant 0 : index
    %23 = vector.load %arg7[%c0_25, %c0_26, %c0_27] : memref<8x8x512xf32, #tpu.memory_space<vmem>>, vector<8x8x512xf32>
    tpu.vector_store %arg7[%c0_25, %c0_26, %c0_27], %22 {strides = array<i32>} : memref<8x8x512xf32, #tpu.memory_space<vmem>>, vector<8x8x512xf32>,
    %cst_28 = arith.constant 0.000000e+00 : f32
    %24 = vector.broadcast %cst_28 : f32 to vector<8x128xf32>
    %c0_29 = arith.constant 0 : index
    %c0_30 = arith.constant 0 : index
    %25 = vector.load %arg9[%c0_29, %c0_30] : memref<8x128xf32, #tpu.memory_space<vmem>>, vector<8x128xf32>
    tpu.vector_store %arg9[%c0_29, %c0_30], %24 {strides = array<i32>} : memref<8x128xf32, #tpu.memory_space<vmem>>, vector<8x128xf32>,
    %cst_31 = arith.constant 0.000000e+00 : f32
    %26 = vector.broadcast %cst_31 : f32 to vector<8x128xf32>
    %c0_32 = arith.constant 0 : index
    %c0_33 = arith.constant 0 : index
    %27 = vector.load %arg10[%c0_32, %c0_33] : memref<8x128xf32, #tpu.memory_space<vmem>>, vector<8x128xf32>
    tpu.vector_store %arg10[%c0_32, %c0_33], %26 {strides = array<i32>} : memref<8x128xf32, #tpu.memory_space<vmem>>, vector<8x128xf32>,
    %c0_i32_34 = arith.constant 0 : i32
    %c8_i32_35 = arith.constant 8 : i32
    %28 = arith.addi %c0_i32_34, %c8_i32_35 : i32
    %c1_i32_36 = arith.constant 1 : i32
    scf.for %arg11 = %c0_i32_34 to %28 step %c1_i32_36  : i32 {
      %c1_i32_47 = arith.constant 1 : i32
      %37 = arith.muli %arg11, %c1_i32_47 : i32
      %c0_i32_48 = arith.constant 0 : i32
      %38 = arith.addi %c0_i32_48, %37 : i32
      %c0_49 = arith.constant 0 : index
      %c0_50 = arith.constant 0 : index
      %39 = vector.load %arg9[%c0_49, %c0_50] : memref<8x128xf32, #tpu.memory_space<vmem>>, vector<8x128xf32>
      %c0_51 = arith.constant 0 : index
      %c0_52 = arith.constant 0 : index
      %40 = vector.load %arg10[%c0_51, %c0_52] : memref<8x128xf32, #tpu.memory_space<vmem>>, vector<8x128xf32>
      %41 = arith.index_cast %38 : i32 to index
      %c0_53 = arith.constant 0 : index
      %c0_54 = arith.constant 0 : index
      %42 = vector.load %arg7[%41, %c0_53, %c0_54] : memref<8x8x512xf32, #tpu.memory_space<vmem>>, vector<1x8x512xf32>
      %43 = vector.shape_cast %42 : vector<1x8x512xf32> to vector<8x512xf32>
      %c1_55 = arith.constant 1 : index
      %c0_56 = arith.constant 0 : index
      %c0_57 = arith.constant 0 : index
      %44 = vector.load %arg3[%c1_55, %c0_56, %c0_57] : memref<2x128x512xf32, #tpu.memory_space<vmem>>, vector<1x128x512xf32>
      %45 = vector.shape_cast %44 : vector<1x128x512xf32> to vector<128x512xf32>
      %cst_58 = arith.constant dense<0.000000e+00> : vector<8x512xf32>
      %46 = tpu.matmul %39, %45, %cst_58 {dimension_numbers = #tpu.dot_dimension_numbers<[1], [0], [0], [1], [0, 0, 1, 1], [], []>} : vector<8x128xf32>, vector<128x512xf32>, vector<8x512xf32> -> vector<8x512xf32>
      %47 = arith.addf %43, %46 : vector<8x512xf32>
      %48 = vector.extract_strided_slice %47 {offsets = [0, 0], sizes = [8, 128], strides = [1, 1]} : vector<8x512xf32> to vector<8x128xf32>
      %49 = arith.negf %48 : vector<8x128xf32>
      %50 = math.exp %49 : vector<8x128xf32>
      %cst_59 = arith.constant 1.000000e+00 : f32
      %51 = vector.broadcast %cst_59 : f32 to vector<8x128xf32>
      %52 = arith.addf %51, %50 : vector<8x128xf32>
      %53 = arith.divf %51, %52 : vector<8x128xf32>
      %54 = vector.extract_strided_slice %47 {offsets = [0, 128], sizes = [8, 128], strides = [1, 1]} : vector<8x512xf32> to vector<8x128xf32>
      %55 = arith.negf %54 : vector<8x128xf32>
      %56 = math.exp %55 : vector<8x128xf32>
      %cst_60 = arith.constant 1.000000e+00 : f32
      %57 = vector.broadcast %cst_60 : f32 to vector<8x128xf32>
      %58 = arith.addf %57, %56 : vector<8x128xf32>
      %59 = arith.divf %57, %58 : vector<8x128xf32>
      %60 = vector.extract_strided_slice %47 {offsets = [0, 256], sizes = [8, 128], strides = [1, 1]} : vector<8x512xf32> to vector<8x128xf32>
      %61 = math.tanh %60 : vector<8x128xf32>
      %62 = vector.extract_strided_slice %47 {offsets = [0, 384], sizes = [8, 128], strides = [1, 1]} : vector<8x512xf32> to vector<8x128xf32>
      %63 = arith.negf %62 : vector<8x128xf32>
      %64 = math.exp %63 : vector<8x128xf32>
      %cst_61 = arith.constant 1.000000e+00 : f32
      %65 = vector.broadcast %cst_61 : f32 to vector<8x128xf32>
      %66 = arith.addf %65, %64 : vector<8x128xf32>
      %67 = arith.divf %65, %66 : vector<8x128xf32>
      %68 = arith.mulf %59, %40 : vector<8x128xf32>
      %69 = arith.mulf %53, %61 : vector<8x128xf32>
      %70 = arith.addf %68, %69 : vector<8x128xf32>
      %71 = math.tanh %70 : vector<8x128xf32>
      %72 = arith.mulf %67, %71 : vector<8x128xf32>
      %c0_62 = arith.constant 0 : index
      %c0_63 = arith.constant 0 : index
      %73 = vector.load %arg10[%c0_62, %c0_63] : memref<8x128xf32, #tpu.memory_space<vmem>>, vector<8x128xf32>
      tpu.vector_store %arg10[%c0_62, %c0_63], %70 {strides = array<i32>} : memref<8x128xf32, #tpu.memory_space<vmem>>, vector<8x128xf32>,
      %c0_64 = arith.constant 0 : index
      %c0_65 = arith.constant 0 : index
      %74 = vector.load %arg9[%c0_64, %c0_65] : memref<8x128xf32, #tpu.memory_space<vmem>>, vector<8x128xf32>
      tpu.vector_store %arg9[%c0_64, %c0_65], %72 {strides = array<i32>} : memref<8x128xf32, #tpu.memory_space<vmem>>, vector<8x128xf32>,
      %75 = arith.index_cast %38 : i32 to index
      %c0_66 = arith.constant 0 : index
      %c0_67 = arith.constant 0 : index
      %76 = vector.load %arg8[%75, %c0_66, %c0_67] : memref<8x8x128xf32, #tpu.memory_space<vmem>>, vector<1x8x128xf32>
      %77 = vector.shape_cast %76 : vector<1x8x128xf32> to vector<8x128xf32>
      %78 = vector.shape_cast %72 : vector<8x128xf32> to vector<1x8x128xf32>
      tpu.vector_store %arg8[%75, %c0_66, %c0_67], %78 {strides = array<i32>} : memref<8x8x128xf32, #tpu.memory_space<vmem>>, vector<1x8x128xf32>,
    }
    %c8_i32_37 = arith.constant 8 : i32
    %c0_38 = arith.constant 0 : index
    %c0_39 = arith.constant 0 : index
    %29 = vector.load %arg9[%c0_38, %c0_39] : memref<8x128xf32, #tpu.memory_space<vmem>>, vector<8x128xf32>
    %c1 = arith.constant 1 : index
    %c0_40 = arith.constant 0 : index
    %c0_41 = arith.constant 0 : index
    %30 = vector.load %arg5[%c1, %c0_40, %c0_41] : memref<2x8x128xf32, #tpu.memory_space<vmem>>, vector<1x8x128xf32>
    %31 = vector.shape_cast %30 : vector<1x8x128xf32> to vector<8x128xf32>
    %32 = vector.shape_cast %29 : vector<8x128xf32> to vector<1x8x128xf32>
    tpu.vector_store %arg5[%c1, %c0_40, %c0_41], %32 {strides = array<i32>} : memref<2x8x128xf32, #tpu.memory_space<vmem>>, vector<1x8x128xf32>,
    %c0_42 = arith.constant 0 : index
    %c0_43 = arith.constant 0 : index
    %33 = vector.load %arg10[%c0_42, %c0_43] : memref<8x128xf32, #tpu.memory_space<vmem>>, vector<8x128xf32>
    %c1_44 = arith.constant 1 : index
    %c0_45 = arith.constant 0 : index
    %c0_46 = arith.constant 0 : index
    %34 = vector.load %arg6[%c1_44, %c0_45, %c0_46] : memref<2x8x128xf32, #tpu.memory_space<vmem>>, vector<1x8x128xf32>
    %35 = vector.shape_cast %34 : vector<1x8x128xf32> to vector<8x128xf32>
    %36 = vector.shape_cast %33 : vector<8x128xf32> to vector<1x8x128xf32>
    tpu.vector_store %arg6[%c1_44, %c0_45, %c0_46], %36 {strides = array<i32>} : memref<2x8x128xf32, #tpu.memory_space<vmem>>, vector<1x8x128xf32>,
    return
  }
  func.func @transform_0(%arg0: i32) -> (i32, i32, i32) {
    %c0_i32 = arith.constant 0 : i32
    %c0_i32_0 = arith.constant 0 : i32
    %c0_i32_1 = arith.constant 0 : i32
    %c0_i32_2 = arith.constant 0 : i32
    return %c0_i32, %c0_i32_0, %c0_i32_1 : i32, i32, i32
  }
  func.func @transform_1(%arg0: i32) -> (i32, i32, i32) {
    %c0_i32 = arith.constant 0 : i32
    %c0_i32_0 = arith.constant 0 : i32
    %c0_i32_1 = arith.constant 0 : i32
    %c0_i32_2 = arith.constant 0 : i32
    return %c0_i32, %c0_i32_0, %c0_i32_1 : i32, i32, i32
  }
  func.func @transform_2(%arg0: i32) -> (i32, i32, i32) {
    %c0_i32 = arith.constant 0 : i32
    %c0_i32_0 = arith.constant 0 : i32
    %c0_i32_1 = arith.constant 0 : i32
    %c0_i32_2 = arith.constant 0 : i32
    return %c0_i32, %c0_i32_0, %c0_i32_1 : i32, i32, i32
  }
  func.func @transform_3(%arg0: i32) -> (i32, i32, i32) {
    %c0_i32 = arith.constant 0 : i32
    %c0_i32_0 = arith.constant 0 : i32
    %c0_i32_1 = arith.constant 0 : i32
    %c0_i32_2 = arith.constant 0 : i32
    return %c0_i32, %c0_i32_0, %c0_i32_1 : i32, i32, i32
  }
  func.func @transform_4(%arg0: i32) -> (i32, i32, i32) {
    %c0_i32 = arith.constant 0 : i32
    %c0_i32_0 = arith.constant 0 : i32
    %c0_i32_1 = arith.constant 0 : i32
    %c0_i32_2 = arith.constant 0 : i32
    return %c0_i32, %c0_i32_0, %c0_i32_1 : i32, i32, i32
  }
  func.func @transform_5(%arg0: i32) -> (i32, i32, i32) {
    %c0_i32 = arith.constant 0 : i32
    %c0_i32_0 = arith.constant 0 : i32
    %c0_i32_1 = arith.constant 0 : i32
    %c0_i32_2 = arith.constant 0 : i32
    return %c0_i32, %c0_i32_0, %c0_i32_1 : i32, i32, i32
  }
}

</mosaic_0001>

<llo_original>
// kernel: encoder_forward.1
$region0: #{encoder_forward.1}
  #allocation0 [shape = 'u32[]', space=smem, size = 0x4, offset = 0x4, fixed_abs, tag = 'smem constant byte address 0x4 - core index']
  #allocation1 [shape = 'u32[72,128]{1,0:T(1,128)}', space=vmem, size = 0x9000, scoped, tag = 'internal scratch']
  #allocation2 [shape = 'f32[8,8,512]{2,1,0:T(8,128)}', space=vmem, size = 0x20000, scoped, tag = 'scratch operand']
  #allocation3 [shape = 'f32[8,8,128]{2,1,0:T(8,128)}', space=vmem, size = 0x8000, scoped, tag = 'scratch operand']
  #allocation4 [shape = 'f32[8,128]{1,0:T(8,128)}', space=vmem, size = 0x1000, scoped, tag = 'scratch operand']
  #allocation5 [shape = 'f32[8,128]{1,0:T(8,128)}', space=vmem, size = 0x1000, scoped, tag = 'scratch operand']
  %s0 = inlined_call_operand.vmem [shape: f32[8,8,512], index: 0, kind: input, shape index: {}]
  %s1 = inlined_call_operand.vmem [shape: f32[1,128,512], index: 1, kind: input, shape index: {}]
  %s2 = inlined_call_operand.vmem [shape: f32[2,128,512], index: 2, kind: input, shape index: {}]
  %s3 = inlined_call_operand.vmem [shape: f32[1,1,512], index: 3, kind: input, shape index: {}]
  %s4 = inlined_call_operand.vmem [shape: f32[2,8,128], index: 4, kind: output, shape index: {0}]
  %s5 = inlined_call_operand.vmem [shape: f32[2,8,128], index: 5, kind: output, shape index: {1}]
  %6 = xla_tuple %s4, %s5
  %s7 = sld [smem:[#allocation0]]
  $region48: #{encoder_forward.1} parent=0
    _
  %s9 = ssub.s32 1, %s7
  %s10 = scalar_select 0, %s9, %s7
  // Predicated region
  $region2: #{encoder_forward.1} parent=0 // pred_check
    _
  $region3: #{encoder_forward.1} parent=0 // pred_check_branch
    %12 = sbr.rel (0) target = $region5
  $region4: #{encoder_forward.1} parent=0 // pred_region
    _
  $region5: #{encoder_forward.1} parent=0 // pred_fallthru
    _
  // Predicated region
  $region6: #{encoder_forward.1} parent=0 // pred_check
    _
  $region7: #{encoder_forward.1} parent=0 // pred_check_branch
    %14 = sbr.rel (0) target = $region9
  $region8: #{encoder_forward.1} parent=0 // pred_region
    _
  $region9: #{encoder_forward.1} parent=0 // pred_fallthru
    _
  // Predicated region
  $region10: #{encoder_forward.1} parent=0 // pred_check
    _
  $region11: #{encoder_forward.1} parent=0 // pred_check_branch
    %16 = sbr.rel (0) target = $region13
  $region12: #{encoder_forward.1} parent=0 // pred_region
    _
  $region13: #{encoder_forward.1} parent=0 // pred_fallthru
    _
  // Predicated region
  $region14: #{encoder_forward.1} parent=0 // pred_check
    _
  $region15: #{encoder_forward.1} parent=0 // pred_check_branch
    %18 = sbr.rel (0) target = $region17
  $region16: #{encoder_forward.1} parent=0 // pred_region
    _
  $region17: #{encoder_forward.1} parent=0 // pred_fallthru
    _
  %19 = vst [vmem:[#allocation4] sm:$0xff] 0.0
  %20 = vst [vmem:[#allocation5] sm:$0xff] 0.0
  loop: start=0, step=1, limit=8
  $region18: #{encoder_forward.1} parent=0 // loop_pre_header
    _
  $region19: #{encoder_forward.1} parent=0 // loop_header
    %s22 = sphi 0, %s26
    %p23 = scmp.ge.s32.totalorder %s22, 8
  $region20: #{encoder_forward.1} parent=0 // loop_header_branch
    %25 = sbr.rel (%p23) target = $region24
  $region21: #{encoder_forward.1} parent=0 // loop_body
    %v27 = vld [vmem:[#allocation4] sm:$0xff]
    %v28 = vld [vmem:[#allocation5] sm:$0xff]
    %s29 = smul.u32 %s22, 4
    %s30 = smul.addr %s29, 8
    %s31 = scalar_lea.vmem %s0, %s30
    %v32 = vld [vmem:[%s31] sm:$0xff]
    %v33 = vld [vmem:[%s31 + $0x8] sm:$0xff]
    %v34 = vld [vmem:[%s31 + $0x10] sm:$0xff]
    %v35 = vld [vmem:[%s31 + $0x18] sm:$0xff]
    %v36 = vld [vmem:[%s2] sm:$0xff]
    %v37 = vld [vmem:[%s2 + $0x8] sm:$0xff]
    %v38 = vld [vmem:[%s2 + $0x10] sm:$0xff]
    %v39 = vld [vmem:[%s2 + $0x18] sm:$0xff]
    %v40 = vld [vmem:[%s2 + $0x20] sm:$0xff]
    %v41 = vld [vmem:[%s2 + $0x28] sm:$0xff]
    %v42 = vld [vmem:[%s2 + $0x30] sm:$0xff]
    %v43 = vld [vmem:[%s2 + $0x38] sm:$0xff]
    %v44 = vld [vmem:[%s2 + $0x40] sm:$0xff]
    %v45 = vld [vmem:[%s2 + $0x48] sm:$0xff]
    %v46 = vld [vmem:[%s2 + $0x50] sm:$0xff]
    %v47 = vld [vmem:[%s2 + $0x58] sm:$0xff]
    %v48 = vld [vmem:[%s2 + $0x60] sm:$0xff]
    %v49 = vld [vmem:[%s2 + $0x68] sm:$0xff]
    %v50 = vld [vmem:[%s2 + $0x70] sm:$0xff]
    %v51 = vld [vmem:[%s2 + $0x78] sm:$0xff]
    %v52 = vld [vmem:[%s2 + $0x80] sm:$0xff]
    %v53 = vld [vmem:[%s2 + $0x88] sm:$0xff]
    %v54 = vld [vmem:[%s2 + $0x90] sm:$0xff]
    %v55 = vld [vmem:[%s2 + $0x98] sm:$0xff]
    %v56 = vld [vmem:[%s2 + $0xa0] sm:$0xff]
    %v57 = vld [vmem:[%s2 + $0xa8] sm:$0xff]
    %v58 = vld [vmem:[%s2 + $0xb0] sm:$0xff]
    %v59 = vld [vmem:[%s2 + $0xb8] sm:$0xff]
    %v60 = vld [vmem:[%s2 + $0xc0] sm:$0xff]
    %v61 = vld [vmem:[%s2 + $0xc8] sm:$0xff]
    %v62 = vld [vmem:[%s2 + $0xd0] sm:$0xff]
    %v63 = vld [vmem:[%s2 + $0xd8] sm:$0xff]
    %v64 = vld [vmem:[%s2 + $0xe0] sm:$0xff]
    %v65 = vld [vmem:[%s2 + $0xe8] sm:$0xff]
    %v66 = vld [vmem:[%s2 + $0xf0] sm:$0xff]
    %v67 = vld [vmem:[%s2 + $0xf8] sm:$0xff]
    %v68 = vld [vmem:[%s2 + $0x100] sm:$0xff]
    %v69 = vld [vmem:[%s2 + $0x108] sm:$0xff]
    %v70 = vld [vmem:[%s2 + $0x110] sm:$0xff]
    %v71 = vld [vmem:[%s2 + $0x118] sm:$0xff]
    %v72 = vld [vmem:[%s2 + $0x120] sm:$0xff]
    %v73 = vld [vmem:[%s2 + $0x128] sm:$0xff]
    %v74 = vld [vmem:[%s2 + $0x130] sm:$0xff]
    %v75 = vld [vmem:[%s2 + $0x138] sm:$0xff]
    %v76 = vld [vmem:[%s2 + $0x140] sm:$0xff]
    %v77 = vld [vmem:[%s2 + $0x148] sm:$0xff]
    %v78 = vld [vmem:[%s2 + $0x150] sm:$0xff]
    %v79 = vld [vmem:[%s2 + $0x158] sm:$0xff]
    %v80 = vld [vmem:[%s2 + $0x160] sm:$0xff]
    %v81 = vld [vmem:[%s2 + $0x168] sm:$0xff]
    %v82 = vld [vmem:[%s2 + $0x170] sm:$0xff]
    %v83 = vld [vmem:[%s2 + $0x178] sm:$0xff]
    %v84 = vld [vmem:[%s2 + $0x180] sm:$0xff]
    %v85 = vld [vmem:[%s2 + $0x188] sm:$0xff]
    %v86 = vld [vmem:[%s2 + $0x190] sm:$0xff]
    %v87 = vld [vmem:[%s2 + $0x198] sm:$0xff]
    %v88 = vld [vmem:[%s2 + $0x1a0] sm:$0xff]
    %v89 = vld [vmem:[%s2 + $0x1a8] sm:$0xff]
    %v90 = vld [vmem:[%s2 + $0x1b0] sm:$0xff]
    %v91 = vld [vmem:[%s2 + $0x1b8] sm:$0xff]
    %v92 = vld [vmem:[%s2 + $0x1c0] sm:$0xff]
    %v93 = vld [vmem:[%s2 + $0x1c8] sm:$0xff]
    %v94 = vld [vmem:[%s2 + $0x1d0] sm:$0xff]
    %v95 = vld [vmem:[%s2 + $0x1d8] sm:$0xff]
    %v96 = vld [vmem:[%s2 + $0x1e0] sm:$0xff]
    %v97 = vld [vmem:[%s2 + $0x1e8] sm:$0xff]
    %v98 = vld [vmem:[%s2 + $0x1f0] sm:$0xff]
    %v99 = vld [vmem:[%s2 + $0x1f8] sm:$0xff]
    %100 = vmatpush.msra.mxu0 %v96
    %101 = vmatpush.msra.mxu0 %v92
    %102 = vmatpush.msra.mxu0 %v88
    %103 = vmatpush.msra.mxu0 %v84
    %104 = vmatpush.msra.mxu0 %v80
    %105 = vmatpush.msra.mxu0 %v76
    %106 = vmatpush.msra.mxu0 %v72
    %107 = vmatpush.msra.mxu0 %v68
    %108 = vmatpush.msra.mxu0 %v64
    %109 = vmatpush.msra.mxu0 %v60
    %110 = vmatpush.msra.mxu0 %v56
    %111 = vmatpush.msra.mxu0 %v52
    %112 = vmatpush.msra.mxu0 %v48
    %113 = vmatpush.msra.mxu0 %v44
    %114 = vmatpush.msra.mxu0 %v40
    %115 = vmatpush.msra.mxu0 %v36
    %116 = vmatmul.f32.gmra.mxu0 %v27
    %v117 = vpop.f32.mrf.mxu0
    %v118 = vadd.f32 0.0, %v117
    %119 = vdwg.mxu0
    %120 = vmatpush.msra.mxu0 %v97
    %121 = vmatpush.msra.mxu0 %v93
    %122 = vmatpush.msra.mxu0 %v89
    %123 = vmatpush.msra.mxu0 %v85
    %124 = vmatpush.msra.mxu0 %v81
    %125 = vmatpush.msra.mxu0 %v77
    %126 = vmatpush.msra.mxu0 %v73
    %127 = vmatpush.msra.mxu0 %v69
    %128 = vmatpush.msra.mxu0 %v65
    %129 = vmatpush.msra.mxu0 %v61
    %130 = vmatpush.msra.mxu0 %v57
    %131 = vmatpush.msra.mxu0 %v53
    %132 = vmatpush.msra.mxu0 %v49
    %133 = vmatpush.msra.mxu0 %v45
    %134 = vmatpush.msra.mxu0 %v41
    %135 = vmatpush.msra.mxu0 %v37
    %136 = vmatmul.f32.gmra.mxu0 %v27
    %v137 = vpop.f32.mrf.mxu0
    %v138 = vadd.f32 0.0, %v137
    %139 = vdwg.mxu0
    %140 = vmatpush.msra.mxu0 %v98
    %141 = vmatpush.msra.mxu0 %v94
    %142 = vmatpush.msra.mxu0 %v90
    %143 = vmatpush.msra.mxu0 %v86
    %144 = vmatpush.msra.mxu0 %v82
    %145 = vmatpush.msra.mxu0 %v78
    %146 = vmatpush.msra.mxu0 %v74
    %147 = vmatpush.msra.mxu0 %v70
    %148 = vmatpush.msra.mxu0 %v66
    %149 = vmatpush.msra.mxu0 %v62
    %150 = vmatpush.msra.mxu0 %v58
    %151 = vmatpush.msra.mxu0 %v54
    %152 = vmatpush.msra.mxu0 %v50
    %153 = vmatpush.msra.mxu0 %v46
    %154 = vmatpush.msra.mxu0 %v42
    %155 = vmatpush.msra.mxu0 %v38
    %156 = vmatmul.f32.gmra.mxu0 %v27
    %v157 = vpop.f32.mrf.mxu0
    %v158 = vadd.f32 0.0, %v157
    %159 = vdwg.mxu0
    %160 = vmatpush.msra.mxu0 %v99
    %161 = vmatpush.msra.mxu0 %v95
    %162 = vmatpush.msra.mxu0 %v91
    %163 = vmatpush.msra.mxu0 %v87
    %164 = vmatpush.msra.mxu0 %v83
    %165 = vmatpush.msra.mxu0 %v79
    %166 = vmatpush.msra.mxu0 %v75
    %167 = vmatpush.msra.mxu0 %v71
    %168 = vmatpush.msra.mxu0 %v67
    %169 = vmatpush.msra.mxu0 %v63
    %170 = vmatpush.msra.mxu0 %v59
    %171 = vmatpush.msra.mxu0 %v55
    %172 = vmatpush.msra.mxu0 %v51
    %173 = vmatpush.msra.mxu0 %v47
    %174 = vmatpush.msra.mxu0 %v43
    %175 = vmatpush.msra.mxu0 %v39
    %176 = vmatmul.f32.gmra.mxu0 %v27
    %v177 = vpop.f32.mrf.mxu0
    %v178 = vadd.f32 0.0, %v177
    %179 = vdwg.mxu0
    %v180 = vadd.f32 %v32, %v118
    %v181 = vadd.f32 %v33, %v138
    %v182 = vadd.f32 %v34, %v158
    %v183 = vadd.f32 %v35, %v178
    %v184 = vxor.u32 %v180, 2147483648
    %v185 = vmul.f32 %v184, 1.442695
    %v186 = vpow.pop %v185
    %v187 = vadd.f32 %v186, 1.0
    %v188 = vrcp.pop %v187
    %v189 = vmul.f32 %v187, %v188
    %v190 = vsub.f32 1.0, %v189
    %v191 = vmul.f32 %v188, %v190
    %v192 = vadd.f32 %v188, %v191
    %vm193 = vweird.f32 %v187
    %vm194 = vweird.f32 %v188
    %vm195 = vmor %vm193, %vm194
    %v196 = vsel %vm195, %v188, %v192
    %v197 = vand.u32 2147483647, %v187
    %vm198 = vcmp.eq.f32.partialorder %v197, 8.507059e+37
    %v199 = vand.u32 %v187, 2147483648
    %v200 = vor.u32 1.1754944e-38, %v199
    %v201 = vsel %vm198, %v200, %v196
    %v202 = vmul.f32 1.0, %v201
    %v203 = vxor.u32 %v181, 2147483648
    %v204 = vmul.f32 %v203, 1.442695
    %v205 = vpow.pop %v204
    %v206 = vadd.f32 %v205, 1.0
    %v207 = vrcp.pop %v206
    %v208 = vmul.f32 %v206, %v207
    %v209 = vsub.f32 1.0, %v208
    %v210 = vmul.f32 %v207, %v209
    %v211 = vadd.f32 %v207, %v210
    %vm212 = vweird.f32 %v206
    %vm213 = vweird.f32 %v207
    %vm214 = vmor %vm212, %vm213
    %v215 = vsel %vm214, %v207, %v211
    %v216 = vand.u32 2147483647, %v206
    %vm217 = vcmp.eq.f32.partialorder %v216, 8.507059e+37
    %v218 = vand.u32 %v206, 2147483648
    %v219 = vor.u32 1.1754944e-38, %v218
    %v220 = vsel %vm217, %v219, %v215
    %v221 = vmul.f32 1.0, %v220
    %v222 = vtanh.pop %v182
    %v223 = vxor.u32 %v183, 2147483648
    %v224 = vmul.f32 %v223, 1.442695
    %v225 = vpow.pop %v224
    %v226 = vadd.f32 %v225, 1.0
    %v227 = vrcp.pop %v226
    %v228 = vmul.f32 %v226, %v227
    %v229 = vsub.f32 1.0, %v228
    %v230 = vmul.f32 %v227, %v229
    %v231 = vadd.f32 %v227, %v230
    %vm232 = vweird.f32 %v226
    %vm233 = vweird.f32 %v227
    %vm234 = vmor %vm232, %vm233
    %v235 = vsel %vm234, %v227, %v231
    %v236 = vand.u32 2147483647, %v226
    %vm237 = vcmp.eq.f32.partialorder %v236, 8.507059e+37
    %v238 = vand.u32 %v226, 2147483648
    %v239 = vor.u32 1.1754944e-38, %v238
    %v240 = vsel %vm237, %v239, %v235
    %v241 = vmul.f32 1.0, %v240
    %v242 = vmul.f32 %v221, %v28
    %v243 = vmul.f32 %v202, %v222
    %v244 = vadd.f32 %v242, %v243
    %v245 = vtanh.pop %v244
    %v246 = vmul.f32 %v241, %v245
    %247 = vst [vmem:[#allocation5] sm:$0xff] %v244
    %248 = vst [vmem:[#allocation4] sm:$0xff] %v246
    %s249 = smul.u32 %s22, 8
    %s250 = scalar_lea.vmem [#allocation3], %s249
    %251 = vst [vmem:[%s250] sm:$0xff] %v246
  $region22: #{encoder_forward.1} parent=0 // loop_footer
    %s26 = sadd.s32 1, %s22
  $region23: #{encoder_forward.1} parent=0 // loop_footer_branch
    %21 = sbr.rel target = $region19
  $region24: #{encoder_forward.1} parent=0 // loop_exit
    _
  %v252 = vld [vmem:[#allocation4] sm:$0xff]
  %253 = vst [vmem:[%s4] sm:$0xff] %v252
  %v254 = vld [vmem:[#allocation5] sm:$0xff]
  %255 = vst [vmem:[%s5] sm:$0xff] %v254
  %v256 = vld [vmem:[#allocation3] sm:$0xff]
  %v257 = vld [vmem:[#allocation3 + $0x8] sm:$0xff]
  %v258 = vld [vmem:[#allocation3 + $0x10] sm:$0xff]
  %v259 = vld [vmem:[#allocation3 + $0x18] sm:$0xff]
  %v260 = vld [vmem:[#allocation3 + $0x20] sm:$0xff]
  %v261 = vld [vmem:[#allocation3 + $0x28] sm:$0xff]
  %v262 = vld [vmem:[#allocation3 + $0x30] sm:$0xff]
  %v263 = vld [vmem:[#allocation3 + $0x38] sm:$0xff]
  %v264 = vld [vmem:[%s1] sm:$0xff]
  %v265 = vld [vmem:[%s1 + $0x8] sm:$0xff]
  %v266 = vld [vmem:[%s1 + $0x10] sm:$0xff]
  %v267 = vld [vmem:[%s1 + $0x18] sm:$0xff]
  %v268 = vld [vmem:[%s1 + $0x20] sm:$0xff]
  %v269 = vld [vmem:[%s1 + $0x28] sm:$0xff]
  %v270 = vld [vmem:[%s1 + $0x30] sm:$0xff]
  %v271 = vld [vmem:[%s1 + $0x38] sm:$0xff]
  %v272 = vld [vmem:[%s1 + $0x40] sm:$0xff]
  %v273 = vld [vmem:[%s1 + $0x48] sm:$0xff]
  %v274 = vld [vmem:[%s1 + $0x50] sm:$0xff]
  %v275 = vld [vmem:[%s1 + $0x58] sm:$0xff]
  %v276 = vld [vmem:[%s1 + $0x60] sm:$0xff]
  %v277 = vld [vmem:[%s1 + $0x68] sm:$0xff]
  %v278 = vld [vmem:[%s1 + $0x70] sm:$0xff]
  %v279 = vld [vmem:[%s1 + $0x78] sm:$0xff]
  %v280 = vld [vmem:[%s1 + $0x80] sm:$0xff]
  %v281 = vld [vmem:[%s1 + $0x88] sm:$0xff]
  %v282 = vld [vmem:[%s1 + $0x90] sm:$0xff]
  %v283 = vld [vmem:[%s1 + $0x98] sm:$0xff]
  %v284 = vld [vmem:[%s1 + $0xa0] sm:$0xff]
  %v285 = vld [vmem:[%s1 + $0xa8] sm:$0xff]
  %v286 = vld [vmem:[%s1 + $0xb0] sm:$0xff]
  %v287 = vld [vmem:[%s1 + $0xb8] sm:$0xff]
  %v288 = vld [vmem:[%s1 + $0xc0] sm:$0xff]
  %v289 = vld [vmem:[%s1 + $0xc8] sm:$0xff]
  %v290 = vld [vmem:[%s1 + $0xd0] sm:$0xff]
  %v291 = vld [vmem:[%s1 + $0xd8] sm:$0xff]
  %v292 = vld [vmem:[%s1 + $0xe0] sm:$0xff]
  %v293 = vld [vmem:[%s1 + $0xe8] sm:$0xff]
  %v294 = vld [vmem:[%s1 + $0xf0] sm:$0xff]
  %v295 = vld [vmem:[%s1 + $0xf8] sm:$0xff]
  %v296 = vld [vmem:[%s1 + $0x100] sm:$0xff]
  %v297 = vld [vmem:[%s1 + $0x108] sm:$0xff]
  %v298 = vld [vmem:[%s1 + $0x110] sm:$0xff]
  %v299 = vld [vmem:[%s1 + $0x118] sm:$0xff]
  %v300 = vld [vmem:[%s1 + $0x120] sm:$0xff]
  %v301 = vld [vmem:[%s1 + $0x128] sm:$0xff]
  %v302 = vld [vmem:[%s1 + $0x130] sm:$0xff]
  %v303 = vld [vmem:[%s1 + $0x138] sm:$0xff]
  %v304 = vld [vmem:[%s1 + $0x140] sm:$0xff]
  %v305 = vld [vmem:[%s1 + $0x148] sm:$0xff]
  %v306 = vld [vmem:[%s1 + $0x150] sm:$0xff]
  %v307 = vld [vmem:[%s1 + $0x158] sm:$0xff]
  %v308 = vld [vmem:[%s1 + $0x160] sm:$0xff]
  %v309 = vld [vmem:[%s1 + $0x168] sm:$0xff]
  %v310 = vld [vmem:[%s1 + $0x170] sm:$0xff]
  %v311 = vld [vmem:[%s1 + $0x178] sm:$0xff]
  %v312 = vld [vmem:[%s1 + $0x180] sm:$0xff]
  %v313 = vld [vmem:[%s1 + $0x188] sm:$0xff]
  %v314 = vld [vmem:[%s1 + $0x190] sm:$0xff]
  %v315 = vld [vmem:[%s1 + $0x198] sm:$0xff]
  %v316 = vld [vmem:[%s1 + $0x1a0] sm:$0xff]
  %v317 = vld [vmem:[%s1 + $0x1a8] sm:$0xff]
  %v318 = vld [vmem:[%s1 + $0x1b0] sm:$0xff]
  %v319 = vld [vmem:[%s1 + $0x1b8] sm:$0xff]
  %v320 = vld [vmem:[%s1 + $0x1c0] sm:$0xff]
  %v321 = vld [vmem:[%s1 + $0x1c8] sm:$0xff]
  %v322 = vld [vmem:[%s1 + $0x1d0] sm:$0xff]
  %v323 = vld [vmem:[%s1 + $0x1d8] sm:$0xff]
  %v324 = vld [vmem:[%s1 + $0x1e0] sm:$0xff]
  %v325 = vld [vmem:[%s1 + $0x1e8] sm:$0xff]
  %v326 = vld [vmem:[%s1 + $0x1f0] sm:$0xff]
  %v327 = vld [vmem:[%s1 + $0x1f8] sm:$0xff]
  %v328 = vld [vmem:[%s3] sm:$0xf]
  %v330 = vperm.slane %v328, 0
  %v331 = vperm.slane %v328, 1
  %v332 = vperm.slane %v328, 2
  %v333 = vperm.slane %v328, 3
  %338 = vmatpush.msra.mxu0 %v324
  %339 = vmatpush.msra.mxu0 %v320
  %340 = vmatpush.msra.mxu0 %v316
  %341 = vmatpush.msra.mxu0 %v312
  %342 = vmatpush.msra.mxu0 %v308
  %343 = vmatpush.msra.mxu0 %v304
  %344 = vmatpush.msra.mxu0 %v300
  %345 = vmatpush.msra.mxu0 %v296
  %346 = vmatpush.msra.mxu0 %v292
  %347 = vmatpush.msra.mxu0 %v288
  %348 = vmatpush.msra.mxu0 %v284
  %349 = vmatpush.msra.mxu0 %v280
  %350 = vmatpush.msra.mxu0 %v276
  %351 = vmatpush.msra.mxu0 %v272
  %352 = vmatpush.msra.mxu0 %v268
  %353 = vmatpush.msra.mxu0 %v264
  %354 = vmatmul.f32.gmra.mxu0 %v256
  %v355 = vpop.f32.mrf.mxu0
  %v356 = vadd.f32 %v330, %v355
  %357 = vmatmul.f32.gmra.mxu0 %v257
  %v358 = vpop.f32.mrf.mxu0
  %v359 = vadd.f32 %v330, %v358
  %360 = vmatmul.f32.gmra.mxu0 %v258
  %v361 = vpop.f32.mrf.mxu0
  %v362 = vadd.f32 %v330, %v361
  %363 = vmatmul.f32.gmra.mxu0 %v259
  %v364 = vpop.f32.mrf.mxu0
  %v365 = vadd.f32 %v330, %v364
  %366 = vmatmul.f32.gmra.mxu0 %v260
  %v367 = vpop.f32.mrf.mxu0
  %v368 = vadd.f32 %v330, %v367
  %369 = vmatmul.f32.gmra.mxu0 %v261
  %v370 = vpop.f32.mrf.mxu0
  %v371 = vadd.f32 %v330, %v370
  %372 = vmatmul.f32.gmra.mxu0 %v262
  %v373 = vpop.f32.mrf.mxu0
  %v374 = vadd.f32 %v330, %v373
  %375 = vmatmul.f32.gmra.mxu0 %v263
  %v376 = vpop.f32.mrf.mxu0
  %v377 = vadd.f32 %v330, %v376
  %378 = vdwg.mxu0
  %379 = vmatpush.msra.mxu0 %v325
  %380 = vmatpush.msra.mxu0 %v321
  %381 = vmatpush.msra.mxu0 %v317
  %382 = vmatpush.msra.mxu0 %v313
  %383 = vmatpush.msra.mxu0 %v309
  %384 = vmatpush.msra.mxu0 %v305
  %385 = vmatpush.msra.mxu0 %v301
  %386 = vmatpush.msra.mxu0 %v297
  %387 = vmatpush.msra.mxu0 %v293
  %388 = vmatpush.msra.mxu0 %v289
  %389 = vmatpush.msra.mxu0 %v285
  %390 = vmatpush.msra.mxu0 %v281
  %391 = vmatpush.msra.mxu0 %v277
  %392 = vmatpush.msra.mxu0 %v273
  %393 = vmatpush.msra.mxu0 %v269
  %394 = vmatpush.msra.mxu0 %v265
  %395 = vmatmul.f32.gmra.mxu0 %v256
  %v396 = vpop.f32.mrf.mxu0
  %v397 = vadd.f32 %v331, %v396
  %398 = vmatmul.f32.gmra.mxu0 %v257
  %v399 = vpop.f32.mrf.mxu0
  %v400 = vadd.f32 %v331, %v399
  %401 = vmatmul.f32.gmra.mxu0 %v258
  %v402 = vpop.f32.mrf.mxu0
  %v403 = vadd.f32 %v331, %v402
  %404 = vmatmul.f32.gmra.mxu0 %v259
  %v405 = vpop.f32.mrf.mxu0
  %v406 = vadd.f32 %v331, %v405
  %407 = vmatmul.f32.gmra.mxu0 %v260
  %v408 = vpop.f32.mrf.mxu0
  %v409 = vadd.f32 %v331, %v408
  %410 = vmatmul.f32.gmra.mxu0 %v261
  %v411 = vpop.f32.mrf.mxu0
  %v412 = vadd.f32 %v331, %v411
  %413 = vmatmul.f32.gmra.mxu0 %v262
  %v414 = vpop.f32.mrf.mxu0
  %v415 = vadd.f32 %v331, %v414
  %416 = vmatmul.f32.gmra.mxu0 %v263
  %v417 = vpop.f32.mrf.mxu0
  %v418 = vadd.f32 %v331, %v417
  %419 = vdwg.mxu0
  %420 = vmatpush.msra.mxu0 %v326
  %421 = vmatpush.msra.mxu0 %v322
  %422 = vmatpush.msra.mxu0 %v318
  %423 = vmatpush.msra.mxu0 %v314
  %424 = vmatpush.msra.mxu0 %v310
  %425 = vmatpush.msra.mxu0 %v306
  %426 = vmatpush.msra.mxu0 %v302
  %427 = vmatpush.msra.mxu0 %v298
  %428 = vmatpush.msra.mxu0 %v294
  %429 = vmatpush.msra.mxu0 %v290
  %430 = vmatpush.msra.mxu0 %v286
  %431 = vmatpush.msra.mxu0 %v282
  %432 = vmatpush.msra.mxu0 %v278
  %433 = vmatpush.msra.mxu0 %v274
  %434 = vmatpush.msra.mxu0 %v270
  %435 = vmatpush.msra.mxu0 %v266
  %436 = vmatmul.f32.gmra.mxu0 %v256
  %v437 = vpop.f32.mrf.mxu0
  %v438 = vadd.f32 %v332, %v437
  %439 = vmatmul.f32.gmra.mxu0 %v257
  %v440 = vpop.f32.mrf.mxu0
  %v441 = vadd.f32 %v332, %v440
  %442 = vmatmul.f32.gmra.mxu0 %v258
  %v443 = vpop.f32.mrf.mxu0
  %v444 = vadd.f32 %v332, %v443
  %445 = vmatmul.f32.gmra.mxu0 %v259
  %v446 = vpop.f32.mrf.mxu0
  %v447 = vadd.f32 %v332, %v446
  %448 = vmatmul.f32.gmra.mxu0 %v260
  %v449 = vpop.f32.mrf.mxu0
  %v450 = vadd.f32 %v332, %v449
  %451 = vmatmul.f32.gmra.mxu0 %v261
  %v452 = vpop.f32.mrf.mxu0
  %v453 = vadd.f32 %v332, %v452
  %454 = vmatmul.f32.gmra.mxu0 %v262
  %v455 = vpop.f32.mrf.mxu0
  %v456 = vadd.f32 %v332, %v455
  %457 = vmatmul.f32.gmra.mxu0 %v263
  %v458 = vpop.f32.mrf.mxu0
  %v459 = vadd.f32 %v332, %v458
  %460 = vdwg.mxu0
  %461 = vmatpush.msra.mxu0 %v327
  %462 = vmatpush.msra.mxu0 %v323
  %463 = vmatpush.msra.mxu0 %v319
  %464 = vmatpush.msra.mxu0 %v315
  %465 = vmatpush.msra.mxu0 %v311
  %466 = vmatpush.msra.mxu0 %v307
  %467 = vmatpush.msra.mxu0 %v303
  %468 = vmatpush.msra.mxu0 %v299
  %469 = vmatpush.msra.mxu0 %v295
  %470 = vmatpush.msra.mxu0 %v291
  %471 = vmatpush.msra.mxu0 %v287
  %472 = vmatpush.msra.mxu0 %v283
  %473 = vmatpush.msra.mxu0 %v279
  %474 = vmatpush.msra.mxu0 %v275
  %475 = vmatpush.msra.mxu0 %v271
  %476 = vmatpush.msra.mxu0 %v267
  %477 = vmatmul.f32.gmra.mxu0 %v256
  %v478 = vpop.f32.mrf.mxu0
  %v479 = vadd.f32 %v333, %v478
  %480 = vmatmul.f32.gmra.mxu0 %v257
  %v481 = vpop.f32.mrf.mxu0
  %v482 = vadd.f32 %v333, %v481
  %483 = vmatmul.f32.gmra.mxu0 %v258
  %v484 = vpop.f32.mrf.mxu0
  %v485 = vadd.f32 %v333, %v484
  %486 = vmatmul.f32.gmra.mxu0 %v259
  %v487 = vpop.f32.mrf.mxu0
  %v488 = vadd.f32 %v333, %v487
  %489 = vmatmul.f32.gmra.mxu0 %v260
  %v490 = vpop.f32.mrf.mxu0
  %v491 = vadd.f32 %v333, %v490
  %492 = vmatmul.f32.gmra.mxu0 %v261
  %v493 = vpop.f32.mrf.mxu0
  %v494 = vadd.f32 %v333, %v493
  %495 = vmatmul.f32.gmra.mxu0 %v262
  %v496 = vpop.f32.mrf.mxu0
  %v497 = vadd.f32 %v333, %v496
  %498 = vmatmul.f32.gmra.mxu0 %v263
  %v499 = vpop.f32.mrf.mxu0
  %v500 = vadd.f32 %v333, %v499
  %501 = vdwg.mxu0
  %502 = vst [vmem:[#allocation2] sm:$0xff] %v356
  %503 = vst [vmem:[#allocation2 + $0x8] sm:$0xff] %v397
  %504 = vst [vmem:[#allocation2 + $0x10] sm:$0xff] %v438
  %505 = vst [vmem:[#allocation2 + $0x18] sm:$0xff] %v479
  %506 = vst [vmem:[#allocation2 + $0x20] sm:$0xff] %v359
  %507 = vst [vmem:[#allocation2 + $0x28] sm:$0xff] %v400
  %508 = vst [vmem:[#allocation2 + $0x30] sm:$0xff] %v441
  %509 = vst [vmem:[#allocation2 + $0x38] sm:$0xff] %v482
  %510 = vst [vmem:[#allocation2 + $0x40] sm:$0xff] %v362
  %511 = vst [vmem:[#allocation2 + $0x48] sm:$0xff] %v403
  %512 = vst [vmem:[#allocation2 + $0x50] sm:$0xff] %v444
  %513 = vst [vmem:[#allocation2 + $0x58] sm:$0xff] %v485
  %514 = vst [vmem:[#allocation2 + $0x60] sm:$0xff] %v365
  %515 = vst [vmem:[#allocation2 + $0x68] sm:$0xff] %v406
  %516 = vst [vmem:[#allocation2 + $0x70] sm:$0xff] %v447
  %517 = vst [vmem:[#allocation2 + $0x78] sm:$0xff] %v488
  %518 = vst [vmem:[#allocation2 + $0x80] sm:$0xff] %v368
  %519 = vst [vmem:[#allocation2 + $0x88] sm:$0xff] %v409
  %520 = vst [vmem:[#allocation2 + $0x90] sm:$0xff] %v450
  %521 = vst [vmem:[#allocation2 + $0x98] sm:$0xff] %v491
  %522 = vst [vmem:[#allocation2 + $0xa0] sm:$0xff] %v371
  %523 = vst [vmem:[#allocation2 + $0xa8] sm:$0xff] %v412
  %524 = vst [vmem:[#allocation2 + $0xb0] sm:$0xff] %v453
  %525 = vst [vmem:[#allocation2 + $0xb8] sm:$0xff] %v494
  %526 = vst [vmem:[#allocation2 + $0xc0] sm:$0xff] %v374
  %527 = vst [vmem:[#allocation2 + $0xc8] sm:$0xff] %v415
  %528 = vst [vmem:[#allocation2 + $0xd0] sm:$0xff] %v456
  %529 = vst [vmem:[#allocation2 + $0xd8] sm:$0xff] %v497
  %530 = vst [vmem:[#allocation2 + $0xe0] sm:$0xff] %v377
  %531 = vst [vmem:[#allocation2 + $0xe8] sm:$0xff] %v418
  %532 = vst [vmem:[#allocation2 + $0xf0] sm:$0xff] %v459
  %533 = vst [vmem:[#allocation2 + $0xf8] sm:$0xff] %v500
  %534 = vst [vmem:[#allocation4] sm:$0xff] 0.0
  %535 = vst [vmem:[#allocation5] sm:$0xff] 0.0
  loop: start=0, step=1, limit=8
  $region25: #{encoder_forward.1} parent=0 // loop_pre_header
    _
  $region26: #{encoder_forward.1} parent=0 // loop_header
    %s537 = sphi 0, %s541
    %p538 = scmp.ge.s32.totalorder %s537, 8
  $region27: #{encoder_forward.1} parent=0 // loop_header_branch
    %540 = sbr.rel (%p538) target = $region31
  $region28: #{encoder_forward.1} parent=0 // loop_body
    %v542 = vld [vmem:[#allocation4] sm:$0xff]
    %v543 = vld [vmem:[#allocation5] sm:$0xff]
    %s544 = smul.u32 %s537, 4
    %s545 = smul.addr %s544, 8
    %s546 = scalar_lea.vmem [#allocation2], %s545
    %v547 = vld [vmem:[%s546] sm:$0xff]
    %v548 = vld [vmem:[%s546 + $0x8] sm:$0xff]
    %v549 = vld [vmem:[%s546 + $0x10] sm:$0xff]
    %v550 = vld [vmem:[%s546 + $0x18] sm:$0xff]
    %s551 = scalar_lea.vmem %s2, 512
    %v552 = vld [vmem:[%s551] sm:$0xff]
    %v553 = vld [vmem:[%s551 + $0x8] sm:$0xff]
    %v554 = vld [vmem:[%s551 + $0x10] sm:$0xff]
    %v555 = vld [vmem:[%s551 + $0x18] sm:$0xff]
    %v556 = vld [vmem:[%s551 + $0x20] sm:$0xff]
    %v557 = vld [vmem:[%s551 + $0x28] sm:$0xff]
    %v558 = vld [vmem:[%s551 + $0x30] sm:$0xff]
    %v559 = vld [vmem:[%s551 + $0x38] sm:$0xff]
    %v560 = vld [vmem:[%s551 + $0x40] sm:$0xff]
    %v561 = vld [vmem:[%s551 + $0x48] sm:$0xff]
    %v562 = vld [vmem:[%s551 + $0x50] sm:$0xff]
    %v563 = vld [vmem:[%s551 + $0x58] sm:$0xff]
    %v564 = vld [vmem:[%s551 + $0x60] sm:$0xff]
    %v565 = vld [vmem:[%s551 + $0x68] sm:$0xff]
    %v566 = vld [vmem:[%s551 + $0x70] sm:$0xff]
    %v567 = vld [vmem:[%s551 + $0x78] sm:$0xff]
    %v568 = vld [vmem:[%s551 + $0x80] sm:$0xff]
    %v569 = vld [vmem:[%s551 + $0x88] sm:$0xff]
    %v570 = vld [vmem:[%s551 + $0x90] sm:$0xff]
    %v571 = vld [vmem:[%s551 + $0x98] sm:$0xff]
    %v572 = vld [vmem:[%s551 + $0xa0] sm:$0xff]
    %v573 = vld [vmem:[%s551 + $0xa8] sm:$0xff]
    %v574 = vld [vmem:[%s551 + $0xb0] sm:$0xff]
    %v575 = vld [vmem:[%s551 + $0xb8] sm:$0xff]
    %v576 = vld [vmem:[%s551 + $0xc0] sm:$0xff]
    %v577 = vld [vmem:[%s551 + $0xc8] sm:$0xff]
    %v578 = vld [vmem:[%s551 + $0xd0] sm:$0xff]
    %v579 = vld [vmem:[%s551 + $0xd8] sm:$0xff]
    %v580 = vld [vmem:[%s551 + $0xe0] sm:$0xff]
    %v581 = vld [vmem:[%s551 + $0xe8] sm:$0xff]
    %v582 = vld [vmem:[%s551 + $0xf0] sm:$0xff]
    %v583 = vld [vmem:[%s551 + $0xf8] sm:$0xff]
    %v584 = vld [vmem:[%s551 + $0x100] sm:$0xff]
    %v585 = vld [vmem:[%s551 + $0x108] sm:$0xff]
    %v586 = vld [vmem:[%s551 + $0x110] sm:$0xff]
    %v587 = vld [vmem:[%s551 + $0x118] sm:$0xff]
    %v588 = vld [vmem:[%s551 + $0x120] sm:$0xff]
    %v589 = vld [vmem:[%s551 + $0x128] sm:$0xff]
    %v590 = vld [vmem:[%s551 + $0x130] sm:$0xff]
    %v591 = vld [vmem:[%s551 + $0x138] sm:$0xff]
    %v592 = vld [vmem:[%s551 + $0x140] sm:$0xff]
    %v593 = vld [vmem:[%s551 + $0x148] sm:$0xff]
    %v594 = vld [vmem:[%s551 + $0x150] sm:$0xff]
    %v595 = vld [vmem:[%s551 + $0x158] sm:$0xff]
    %v596 = vld [vmem:[%s551 + $0x160] sm:$0xff]
    %v597 = vld [vmem:[%s551 + $0x168] sm:$0xff]
    %v598 = vld [vmem:[%s551 + $0x170] sm:$0xff]
    %v599 = vld [vmem:[%s551 + $0x178] sm:$0xff]
    %v600 = vld [vmem:[%s551 + $0x180] sm:$0xff]
    %v601 = vld [vmem:[%s551 + $0x188] sm:$0xff]
    %v602 = vld [vmem:[%s551 + $0x190] sm:$0xff]
    %v603 = vld [vmem:[%s551 + $0x198] sm:$0xff]
    %v604 = vld [vmem:[%s551 + $0x1a0] sm:$0xff]
    %v605 = vld [vmem:[%s551 + $0x1a8] sm:$0xff]
    %v606 = vld [vmem:[%s551 + $0x1b0] sm:$0xff]
    %v607 = vld [vmem:[%s551 + $0x1b8] sm:$0xff]
    %v608 = vld [vmem:[%s551 + $0x1c0] sm:$0xff]
    %v609 = vld [vmem:[%s551 + $0x1c8] sm:$0xff]
    %v610 = vld [vmem:[%s551 + $0x1d0] sm:$0xff]
    %v611 = vld [vmem:[%s551 + $0x1d8] sm:$0xff]
    %v612 = vld [vmem:[%s551 + $0x1e0] sm:$0xff]
    %v613 = vld [vmem:[%s551 + $0x1e8] sm:$0xff]
    %v614 = vld [vmem:[%s551 + $0x1f0] sm:$0xff]
    %v615 = vld [vmem:[%s551 + $0x1f8] sm:$0xff]
    %616 = vmatpush.msra.mxu0 %v612
    %617 = vmatpush.msra.mxu0 %v608
    %618 = vmatpush.msra.mxu0 %v604
    %619 = vmatpush.msra.mxu0 %v600
    %620 = vmatpush.msra.mxu0 %v596
    %621 = vmatpush.msra.mxu0 %v592
    %622 = vmatpush.msra.mxu0 %v588
    %623 = vmatpush.msra.mxu0 %v584
    %624 = vmatpush.msra.mxu0 %v580
    %625 = vmatpush.msra.mxu0 %v576
    %626 = vmatpush.msra.mxu0 %v572
    %627 = vmatpush.msra.mxu0 %v568
    %628 = vmatpush.msra.mxu0 %v564
    %629 = vmatpush.msra.mxu0 %v560
    %630 = vmatpush.msra.mxu0 %v556
    %631 = vmatpush.msra.mxu0 %v552
    %632 = vmatmul.f32.gmra.mxu0 %v542
    %v633 = vpop.f32.mrf.mxu0
    %v634 = vadd.f32 0.0, %v633
    %635 = vdwg.mxu0
    %636 = vmatpush.msra.mxu0 %v613
    %637 = vmatpush.msra.mxu0 %v609
    %638 = vmatpush.msra.mxu0 %v605
    %639 = vmatpush.msra.mxu0 %v601
    %640 = vmatpush.msra.mxu0 %v597
    %641 = vmatpush.msra.mxu0 %v593
    %642 = vmatpush.msra.mxu0 %v589
    %643 = vmatpush.msra.mxu0 %v585
    %644 = vmatpush.msra.mxu0 %v581
    %645 = vmatpush.msra.mxu0 %v577
    %646 = vmatpush.msra.mxu0 %v573
    %647 = vmatpush.msra.mxu0 %v569
    %648 = vmatpush.msra.mxu0 %v565
    %649 = vmatpush.msra.mxu0 %v561
    %650 = vmatpush.msra.mxu0 %v557
    %651 = vmatpush.msra.mxu0 %v553
    %652 = vmatmul.f32.gmra.mxu0 %v542
    %v653 = vpop.f32.mrf.mxu0
    %v654 = vadd.f32 0.0, %v653
    %655 = vdwg.mxu0
    %656 = vmatpush.msra.mxu0 %v614
    %657 = vmatpush.msra.mxu0 %v610
    %658 = vmatpush.msra.mxu0 %v606
    %659 = vmatpush.msra.mxu0 %v602
    %660 = vmatpush.msra.mxu0 %v598
    %661 = vmatpush.msra.mxu0 %v594
    %662 = vmatpush.msra.mxu0 %v590
    %663 = vmatpush.msra.mxu0 %v586
    %664 = vmatpush.msra.mxu0 %v582
    %665 = vmatpush.msra.mxu0 %v578
    %666 = vmatpush.msra.mxu0 %v574
    %667 = vmatpush.msra.mxu0 %v570
    %668 = vmatpush.msra.mxu0 %v566
    %669 = vmatpush.msra.mxu0 %v562
    %670 = vmatpush.msra.mxu0 %v558
    %671 = vmatpush.msra.mxu0 %v554
    %672 = vmatmul.f32.gmra.mxu0 %v542
    %v673 = vpop.f32.mrf.mxu0
    %v674 = vadd.f32 0.0, %v673
    %675 = vdwg.mxu0
    %676 = vmatpush.msra.mxu0 %v615
    %677 = vmatpush.msra.mxu0 %v611
    %678 = vmatpush.msra.mxu0 %v607
    %679 = vmatpush.msra.mxu0 %v603
    %680 = vmatpush.msra.mxu0 %v599
    %681 = vmatpush.msra.mxu0 %v595
    %682 = vmatpush.msra.mxu0 %v591
    %683 = vmatpush.msra.mxu0 %v587
    %684 = vmatpush.msra.mxu0 %v583
    %685 = vmatpush.msra.mxu0 %v579
    %686 = vmatpush.msra.mxu0 %v575
    %687 = vmatpush.msra.mxu0 %v571
    %688 = vmatpush.msra.mxu0 %v567
    %689 = vmatpush.msra.mxu0 %v563
    %690 = vmatpush.msra.mxu0 %v559
    %691 = vmatpush.msra.mxu0 %v555
    %692 = vmatmul.f32.gmra.mxu0 %v542
    %v693 = vpop.f32.mrf.mxu0
    %v694 = vadd.f32 0.0, %v693
    %695 = vdwg.mxu0
    %v696 = vadd.f32 %v547, %v634
    %v697 = vadd.f32 %v548, %v654
    %v698 = vadd.f32 %v549, %v674
    %v699 = vadd.f32 %v550, %v694
    %v700 = vxor.u32 %v696, 2147483648
    %v701 = vmul.f32 %v700, 1.442695
    %v702 = vpow.pop %v701
    %v703 = vadd.f32 %v702, 1.0
    %v704 = vrcp.pop %v703
    %v705 = vmul.f32 %v703, %v704
    %v706 = vsub.f32 1.0, %v705
    %v707 = vmul.f32 %v704, %v706
    %v708 = vadd.f32 %v704, %v707
    %vm709 = vweird.f32 %v703
    %vm710 = vweird.f32 %v704
    %vm711 = vmor %vm709, %vm710
    %v712 = vsel %vm711, %v704, %v708
    %v713 = vand.u32 2147483647, %v703
    %vm714 = vcmp.eq.f32.partialorder %v713, 8.507059e+37
    %v715 = vand.u32 %v703, 2147483648
    %v716 = vor.u32 1.1754944e-38, %v715
    %v717 = vsel %vm714, %v716, %v712
    %v718 = vmul.f32 1.0, %v717
    %v719 = vxor.u32 %v697, 2147483648
    %v720 = vmul.f32 %v719, 1.442695
    %v721 = vpow.pop %v720
    %v722 = vadd.f32 %v721, 1.0
    %v723 = vrcp.pop %v722
    %v724 = vmul.f32 %v722, %v723
    %v725 = vsub.f32 1.0, %v724
    %v726 = vmul.f32 %v723, %v725
    %v727 = vadd.f32 %v723, %v726
    %vm728 = vweird.f32 %v722
    %vm729 = vweird.f32 %v723
    %vm730 = vmor %vm728, %vm729
    %v731 = vsel %vm730, %v723, %v727
    %v732 = vand.u32 2147483647, %v722
    %vm733 = vcmp.eq.f32.partialorder %v732, 8.507059e+37
    %v734 = vand.u32 %v722, 2147483648
    %v735 = vor.u32 1.1754944e-38, %v734
    %v736 = vsel %vm733, %v735, %v731
    %v737 = vmul.f32 1.0, %v736
    %v738 = vtanh.pop %v698
    %v739 = vxor.u32 %v699, 2147483648
    %v740 = vmul.f32 %v739, 1.442695
    %v741 = vpow.pop %v740
    %v742 = vadd.f32 %v741, 1.0
    %v743 = vrcp.pop %v742
    %v744 = vmul.f32 %v742, %v743
    %v745 = vsub.f32 1.0, %v744
    %v746 = vmul.f32 %v743, %v745
    %v747 = vadd.f32 %v743, %v746
    %vm748 = vweird.f32 %v742
    %vm749 = vweird.f32 %v743
    %vm750 = vmor %vm748, %vm749
    %v751 = vsel %vm750, %v743, %v747
    %v752 = vand.u32 2147483647, %v742
    %vm753 = vcmp.eq.f32.partialorder %v752, 8.507059e+37
    %v754 = vand.u32 %v742, 2147483648
    %v755 = vor.u32 1.1754944e-38, %v754
    %v756 = vsel %vm753, %v755, %v751
    %v757 = vmul.f32 1.0, %v756
    %v758 = vmul.f32 %v737, %v543
    %v759 = vmul.f32 %v718, %v738
    %v760 = vadd.f32 %v758, %v759
    %v761 = vtanh.pop %v760
    %v762 = vmul.f32 %v757, %v761
    %763 = vst [vmem:[#allocation5] sm:$0xff] %v760
    %764 = vst [vmem:[#allocation4] sm:$0xff] %v762
    %s765 = smul.u32 %s537, 8
    %s766 = scalar_lea.vmem [#allocation3], %s765
    %767 = vst [vmem:[%s766] sm:$0xff] %v762
  $region29: #{encoder_forward.1} parent=0 // loop_footer
    %s541 = sadd.s32 1, %s537
  $region30: #{encoder_forward.1} parent=0 // loop_footer_branch
    %536 = sbr.rel target = $region26
  $region31: #{encoder_forward.1} parent=0 // loop_exit
    _
  %v768 = vld [vmem:[#allocation4] sm:$0xff]
  %s769 = scalar_lea.vmem %s4, 8
  %770 = vst [vmem:[%s769] sm:$0xff] %v768
  %v771 = vld [vmem:[#allocation5] sm:$0xff]
  %s772 = scalar_lea.vmem %s5, 8
  %773 = vst [vmem:[%s772] sm:$0xff] %v771
  // Predicated region
  $region32: #{encoder_forward.1} parent=0 // pred_check
    _
  $region33: #{encoder_forward.1} parent=0 // pred_check_branch
    %775 = sbr.rel (0) target = $region35
  $region34: #{encoder_forward.1} parent=0 // pred_region
    _
  $region35: #{encoder_forward.1} parent=0 // pred_fallthru
    _
  // Predicated region
  $region36: #{encoder_forward.1} parent=0 // pred_check
    _
  $region37: #{encoder_forward.1} parent=0 // pred_check_branch
    %777 = sbr.rel (0) target = $region39
  $region38: #{encoder_forward.1} parent=0 // pred_region
    _
  $region39: #{encoder_forward.1} parent=0 // pred_fallthru
    _
  // Predicated region
  $region40: #{encoder_forward.1} parent=0 // pred_check
    _
  $region41: #{encoder_forward.1} parent=0 // pred_check_branch
    %779 = sbr.rel (0) target = $region43
  $region42: #{encoder_forward.1} parent=0 // pred_region
    _
  $region43: #{encoder_forward.1} parent=0 // pred_fallthru
    _
  // Predicated region
  $region44: #{encoder_forward.1} parent=0 // pred_check
    _
  $region45: #{encoder_forward.1} parent=0 // pred_check_branch
    %781 = sbr.rel (0) target = $region47
  $region46: #{encoder_forward.1} parent=0 // pred_region
    _
  $region47: #{encoder_forward.1} parent=0 // pred_fallthru
    _

</llo_original>
